<compile_context>
chip_gen: v7x
topology: tpu7x:2x2x1
jax: 0.10.0
libtpu: 0.0.40
codegen_flags: <defaults>
</compile_context>

<pallas_src>
import math

import jax
import jax.numpy as jnp
from jax.experimental import pallas as pl
from jax.experimental.pallas import tpu as pltpu

_LANE = 128
_MAX_LANE_WIDTH = 8 * 1024  # elements per row of the lane-dense slab (<= 32 KiB rows @ f32)


# ----------------------------- chip-aware policy -----------------------------

def _chip_profile():
    """(block_bytes_cap, vmem_limit_bytes, num_tensorcores) for the local chip.

    v4/v5e/v6e have 128 MiB physical VMEM and a single TensorCore -> big blocks.
    v7x has 64 MiB per TC and 2 TCs -> conservative cap. Unknown chips fall back
    to the conservative (v7x-safe) numbers.
    """
    kind = ""
    try:
        kind = jax.devices()[0].device_kind.lower()
    except Exception:
        pass
    if any(g in kind for g in ("v4", "v5", "v6")):
        return 16 * 1024 * 1024, 64 * 1024 * 1024, 1
    if "v7" in kind:
        return 6 * 1024 * 1024, 32 * 1024 * 1024, 2
    return 6 * 1024 * 1024, 32 * 1024 * 1024, 1


def _min_sublane_rows(dtype) -> int:
    """Minimum second-to-last-dim tile for this dtype (sub-32-bit packs along sublanes)."""
    bits = jnp.dtype(dtype).itemsize * 8
    if bits >= 32:
        return 8
    if bits == 16:
        return 16
    return 32  # int8 / fp8


def _lane_dense_width(total_elems: int):
    """Largest W <= _MAX_LANE_WIDTH that is a multiple of 128 and divides total_elems."""
    if total_elems <= 0 or total_elems % _LANE != 0:
        return None
    q = total_elems // _LANE
    for d in range(min(q, _MAX_LANE_WIDTH // _LANE), 0, -1):
        if q % d == 0:
            return d * _LANE
    return _LANE


def _choose_tile_rows(rows: int, width: int, dtype, block_bytes_cap: int,
                      num_cores: int) -> int:
    """Row tile: full-extent single block when it fits the cap (small-input fast
    path), otherwise the largest sublane-aligned tile under the cap. The
    min-grid-steps shrink only runs on multi-TC chips (v7x)."""
    sub = _min_sublane_rows(dtype)
    row_bytes = width * jnp.dtype(dtype).itemsize
    max_rows = max(sub, block_bytes_cap // max(1, row_bytes))
    if rows <= max_rows:
        return rows  # single full-extent block
    tile = max(sub, (max_rows // sub) * sub)
    if num_cores > 1:
        min_steps = 2 * num_cores
        while (tile > sub
               and pl.cdiv(rows, tile) < min_steps
               and rows >= min_steps * sub):
            tile = max(sub, ((tile // 2) // sub) * sub)
    return tile


# ------------------------------- Pallas kernel -------------------------------

def _copy_kernel(src_ref, dst_ref):
    """Identity forward (collider is None): stream the ray-bundle tile through VMEM."""
    dst_ref[...] = src_ref[...]


def _pallas_copy_2d(x2d: jax.Array, tile_rows: int, tile_cols: int,
                    vmem_limit_bytes: int) -> jax.Array:
    rows, cols = x2d.shape
    grid = (pl.cdiv(rows, tile_rows), pl.cdiv(cols, tile_cols))
    return pl.pallas_call(
        _copy_kernel,
        out_shape=jax.ShapeDtypeStruct((rows, cols), x2d.dtype),
        grid=grid,
        in_specs=[pl.BlockSpec((tile_rows, tile_cols), lambda i, j: (i, j))],
        out_specs=pl.BlockSpec((tile_rows, tile_cols), lambda i, j: (i, j)),
        compiler_params=pltpu.CompilerParams(
            dimension_semantics=("parallel", "parallel"),
            vmem_limit_bytes=vmem_limit_bytes,
        ),
    )(x2d)


def model_forward(rays: jax.Array, *, block_bytes_cap: int | None = None) -> dict:
    """Pallas copy of the ray bundle (used only when a fresh buffer is required).

    The buffer is re-viewed as a lane-dense (rows, W) slab with W a large
    multiple of 128 whenever the element count allows it, so DMA runs with
    unmasked full-lane stores regardless of the original feature width.
    """
    chip_cap, vmem_limit, num_cores = _chip_profile()
    if block_bytes_cap is None:
        block_bytes_cap = chip_cap

    orig_shape = rays.shape
    total = int(math.prod(orig_shape)) if orig_shape else int(rays.size)
    if total == 0:
        return {"ray_bundle": rays}

    itemsize = jnp.dtype(rays.dtype).itemsize
    width = _lane_dense_width(total)
    if width is not None:
        # Lane-dense slab path (the common case).
        rows = total // width
        x2d = rays.reshape(rows, width)
        tile_rows = _choose_tile_rows(rows, width, rays.dtype, block_bytes_cap, num_cores)
        out2d = _pallas_copy_2d(x2d, tile_rows, width, vmem_limit)
        return {"ray_bundle": out2d.reshape(orig_shape)}

    # Fallback: total element count is not a multiple of 128 -> keep the original
    # 2-D layout (full-width feature blocks; masked stores on the lane tail).
    x2d = rays.reshape(-1, orig_shape[-1]) if rays.ndim >= 2 else rays.reshape(1, -1)
    rows, feat = x2d.shape
    sub = _min_sublane_rows(rays.dtype)
    if sub * feat * itemsize > block_bytes_cap and feat > _LANE:
        # Feature-dim split keeps very wide ray bundles inside the VMEM budget.
        tile_feat = ((block_bytes_cap // (sub * itemsize)) // _LANE) * _LANE
        tile_feat = max(_LANE, min(tile_feat, (feat // _LANE) * _LANE))
        tile_rows = rows if rows < sub else sub
    else:
        tile_feat = feat
        tile_rows = _choose_tile_rows(rows, feat, rays.dtype, block_bytes_cap, num_cores)
    out2d = _pallas_copy_2d(x2d, tile_rows, tile_feat, vmem_limit)
    return {"ray_bundle": out2d.reshape(orig_shape)}


# ------------------------------- Model wrapper --------------------------------

class PallasModel:
    """JAX/Pallas mirror of the abstract base Model."""

    def __init__(self, num_train_data: int, **kwargs):
        self.num_train_data = num_train_data
        self.kwargs = kwargs
        self.collider = None
        self.callbacks = None
        # nn.Parameter(torch.empty(0)) -> deterministic empty array
        self.device_indicator_param = jnp.empty((0,), dtype=jnp.float32)
        self.populate_modules()

    def populate_modules(self):
        """Base class registers no modules."""

    @property
    def device(self):
        return next(iter(self.device_indicator_param.devices()))

    def forward(self, rays: jax.Array, *, copy: bool = False) -> dict:
        if self.collider is not None:
            rays = self.collider(rays)  # never taken: collider is None in the base class
        if not copy:
            # Default: collider is None => forward is the identity hand-off to
            # get_outputs; zero data movement is the optimal implementation.
            return {"ray_bundle": rays}
        # Only when a distinct output buffer is explicitly requested do we run
        # the bandwidth-tuned Pallas streaming copy.
        return model_forward(rays)


# ------------------------------------ main -------------------------------------

if __name__ == "__main__":
    key = jax.random.PRNGKey(0)
    k1, k2, k3, k4 = jax.random.split(key, 4)

    model = PallasModel(num_train_data=8)

    # 1) Default zero-copy path: identity, no kernel launch, no data movement.
    rays = jax.random.normal(k1, (16, 96), dtype=jnp.float32)
    assert model.forward(rays)["ray_bundle"] is rays

    # 2) Explicit-copy path: lane-dense slab (16*96 = 1536 = 12*128), single block.
    out = jax.block_until_ready(model.forward(rays, copy=True)["ray_bundle"])
    assert out.shape == rays.shape and out.dtype == rays.dtype
    assert bool(jnp.all(out == rays))

    # 3) bf16 + 3-D bundle: dtype-aware sublane tiling + lane-dense flatten.
    rays_bf16 = jax.random.normal(k2, (2, 24, 128), dtype=jnp.float32).astype(jnp.bfloat16)
    out_bf16 = jax.block_until_ready(model.forward(rays_bf16, copy=True)["ray_bundle"])
    assert out_bf16.shape == rays_bf16.shape and out_bf16.dtype == jnp.bfloat16
    assert bool(jnp.all(out_bf16 == rays_bf16))

    # 4) Multi-step pipelined grid (forced via a small block cap override).
    rays_big = jax.random.normal(k3, (256, 512), dtype=jnp.float32)
    out_big = jax.block_until_ready(
        model_forward(rays_big, block_bytes_cap=256 * 1024)["ray_bundle"])
    assert bool(jnp.all(out_big == rays_big))

    # 5) Non-128-multiple element count: full-extent fallback path (masked stores).
    rays_ragged = jax.random.normal(k4, (20, 37), dtype=jnp.float32)
    out_ragged = jax.block_until_ready(model.forward(rays_ragged, copy=True)["ray_bundle"])
    assert bool(jnp.all(out_ragged == rays_ragged))

    assert model.device_indicator_param.shape == (0,)
    print("KERNEL_OK")
</pallas_src>

<mosaic_0001>
module attributes {stable_mosaic.version = 11 : i64} {
  func.func @_copy_kernel(%arg0: i32, %arg1: i32, %arg2: memref<1x1536xf32, #tpu.memory_space<vmem>>, %arg3: memref<1x1536xf32, #tpu.memory_space<vmem>>) attributes {dimension_semantics = [#tpu.dimension_semantics<parallel>, #tpu.dimension_semantics<parallel>], iteration_bounds = array<i64: 1, 1>, scalar_prefetch = 0 : i64, scratch_operands = 0 : i64, tpu.core_type = #tpu.core_type<tc>, window_params = [{transform_indices = @transform_0, window_bounds = array<i64: 1, 1536>}, {transform_indices = @transform_1, window_bounds = array<i64: 1, 1536>}]} {
    %c0 = arith.constant 0 : index
    %c0_0 = arith.constant 0 : index
    %0 = vector.load %arg2[%c0, %c0_0] : memref<1x1536xf32, #tpu.memory_space<vmem>>, vector<1x1536xf32>
    %c0_1 = arith.constant 0 : index
    %c0_2 = arith.constant 0 : index
    %1 = vector.load %arg3[%c0_1, %c0_2] : memref<1x1536xf32, #tpu.memory_space<vmem>>, vector<1x1536xf32>
    tpu.vector_store %arg3[%c0_1, %c0_2], %0 {strides = array<i32>} : memref<1x1536xf32, #tpu.memory_space<vmem>>, vector<1x1536xf32>,
    return
  }
  func.func @transform_0(%arg0: i32, %arg1: i32) -> (i32, i32) {
    %c0_i32 = arith.constant 0 : i32
    return %arg0, %arg1 : i32, i32
  }
  func.func @transform_1(%arg0: i32, %arg1: i32) -> (i32, i32) {
    %c0_i32 = arith.constant 0 : i32
    return %arg0, %arg1 : i32, i32
  }
}

</mosaic_0001>

<llo_original>
// kernel: tpu_custom_call.1
$region0: #{tpu_custom_call.1}
  #allocation0 [shape = 'u32[]', space=smem, size = 0x4, offset = 0x4, fixed_abs, tag = 'smem constant byte address 0x4 - core index']
  #allocation1 [shape = 'u32[144,128]{1,0:T(1,128)}', space=vmem, size = 0x12000, scoped, tag = 'internal scratch']
  %s0 = inlined_call_operand.hbm [shape: f32[1,1536], index: 0, kind: input, shape index: {}]
  %s1 = inlined_call_operand.hbm [shape: f32[1,1536], index: 1, kind: output, shape index: {}]
  %s2 = sld [smem:[#allocation0]]
  $region18: #{tpu_custom_call.1} parent=0
    _
  %s4 = ssub.s32 1, %s2
  %s5 = scalar_select 0, %s4, %s2
  $region1: #{tpu_custom_call.1} parent=0
    #allocation2 [shape = 'u8[6144]{0}', space=vmem, size = 0x1800, scoped, tag = 'input window, operand 0, single buffered']
    #allocation3 [shape = 's32[1]{0}', space=sflag, size = 0x4, scoped, tag = 'scoped memory for tpu_custom_call.1']
    #allocation4 [shape = 's32[1]{0}', space=sflag, size = 0x4, scoped, tag = 'scoped memory for tpu_custom_call.1']
    #allocation5 [shape = 'u8[6144]{0}', space=vmem, size = 0x1800, scoped, tag = 'output window, operand 0, single buffered']
    %6 = vsyncpa [#allocation3], 0
    %7 = vsyncpa [#allocation4], 0
    // Predicated region
    $region2: #{tpu_custom_call.1} parent=1 // pred_check
      _
    $region3: #{tpu_custom_call.1} parent=1 // pred_check_branch
      %9 = sbr.rel (0) target = $region5
    $region4: #{tpu_custom_call.1} parent=1 // pred_region
      %s11 = ssub.s32 192, 192
      %12 = vsyncadd [#allocation3], %s11
      %s14 = sshll.u32 [#allocation2], 4
      %s15 = int_to_ptr.vmem [resolvable:$true] %s14
      %17 = dma.hbm_to_vmem [thread:$0]  %s0, 192, %s15, [#allocation3]
    $region5: #{tpu_custom_call.1} parent=1 // pred_fallthru
      _
    // Predicated region
    $region6: #{tpu_custom_call.1} parent=1 // pred_check
      _
    $region7: #{tpu_custom_call.1} parent=1 // pred_check_branch
      %19 = sbr.rel (0) target = $region9
    $region8: #{tpu_custom_call.1} parent=1 // pred_region
      %20 = dma.done [#allocation3], 192
    $region9: #{tpu_custom_call.1} parent=1 // pred_fallthru
      _
    %v21 = vld [vmem:[#allocation2] sm:$0xff]
    %v22 = vld [vmem:[#allocation2 + $0x8] sm:$0xf]
    %23 = vst [vmem:[#allocation5] sm:$0xff] %v21
    %v24 = vlaneseq
    %vm25 = vcmp.ge.s32.totalorder %v24, 0
    %vm26 = vcmp.lt.s32.totalorder %v24, 512
    %vm27 = vmand %vm25, %vm26
    %28 = vst.msk [vmem:[#allocation5 + $0x8] sm:$0xf] %vm27, %v22
    // Predicated region
    $region10: #{tpu_custom_call.1} parent=1 // pred_check
      _
    $region11: #{tpu_custom_call.1} parent=1 // pred_check_branch
      %30 = sbr.rel (0) target = $region13
    $region12: #{tpu_custom_call.1} parent=1 // pred_region
      %s32 = ssub.s32 192, 192
      %33 = vsyncadd [#allocation4], %s32
      %s35 = sshll.u32 [#allocation5], 4
      %s36 = int_to_ptr.vmem [resolvable:$true] %s35
      %38 = dma.vmem_to_hbm [thread:$0]  %s36, 192, %s1, [#allocation4]
    $region13: #{tpu_custom_call.1} parent=1 // pred_fallthru
      _
    // Predicated region
    $region14: #{tpu_custom_call.1} parent=1 // pred_check
      _
    $region15: #{tpu_custom_call.1} parent=1 // pred_check_branch
      %40 = sbr.rel (0) target = $region17
    $region16: #{tpu_custom_call.1} parent=1 // pred_region
      %41 = dma.done [#allocation4], 192
    $region17: #{tpu_custom_call.1} parent=1 // pred_fallthru
      _
    %42 = vsyncpa [#allocation3], 1
    %43 = vsyncpa [#allocation4], 1

</llo_original>
